<compile_context>
chip_gen: v6e
topology: v6e:2x2x1
jax: 0.10.0
libtpu: 0.0.40
codegen_flags: <defaults>
</compile_context>

<pallas_src>
import functools

import jax
import jax.numpy as jnp
from jax.experimental import pallas as pl
from jax.experimental.pallas import tpu as pltpu


def _round_up(x, m):
    return ((x + m - 1) // m) * m


def _sublane(dtype):
    # Sublane packing granularity: 8 rows for 4-byte, 16 for 2-byte, 32 for 1-byte.
    return max(8, 32 // max(jnp.dtype(dtype).itemsize, 1))


def _vmem_sizes():
    """Generation-aware (vmem_limit_bytes, tile budget) pair."""
    phys = 64 << 20  # conservative fallback: v7x per-TC VMEM
    try:
        info = pltpu.get_tpu_info()
        phys = int(getattr(info, "vmem_capacity_bytes", phys))
    except Exception:
        pass
    limit = (phys * 13) // 16                      # 52 MiB (v7x) / 104 MiB (v5e/v6e)
    budget = max(limit - (24 << 20), limit // 2)   # ~28 MiB (v7x) / ~80 MiB (v5e/v6e)
    return limit, budget


def _auto_tn(d_model, n_pad, w_dtype, tile_budget):
    """Label-tile width: keep the (double-buffered) W tile to <= ~1/3 of budget."""
    w_b = jnp.dtype(w_dtype).itemsize
    max_tn = max((tile_budget // 3) // (2 * d_model * w_b), 1)
    max_tn = max((max_tn // 128) * 128, 128)
    return min(n_pad, max_tn)


def _auto_tm(M, d_model, tn, x_dtype, out_dtype, w_dtype, sub, budget_bytes,
             tm_cap=2048):
    """Largest row tile keeping double-buffered x/out tiles + W/b within budget."""
    x_b = jnp.dtype(x_dtype).itemsize
    o_b = jnp.dtype(out_dtype).itemsize
    w_b = jnp.dtype(w_dtype).itemsize
    wb_bytes = 2 * (d_model * tn * w_b + tn * 4)   # double-buffered W + b tiles
    per_row = 2 * (d_model * x_b + tn * o_b)       # double-buffered x + out rows
    avail = max(budget_bytes - wb_bytes, per_row * sub)
    tm = min(avail // per_row, tm_cap)
    tm = max((tm // sub) * sub, sub)
    # Keep >= 4 row-grid steps when M allows (>= 2 pipelined steps per TC on v7x).
    quarter = _round_up(max(-(-M // 4), 1), sub)
    return max(min(tm, quarter), sub)


def _head_kernel(x_ref, w_ref, b_ref, o_ref, *, mxu_dtype):
    # x_ref: (tm, d_model), w_ref: (d_model, tn), b_ref: (1, tn), o_ref: (tm, tn)
    x = x_ref[...]
    w = w_ref[...]
    if mxu_dtype is not None and x.dtype != mxu_dtype:
        # bf16 MXU passes (v5e/v6e win); accumulation stays f32.
        x = x.astype(mxu_dtype)
        w = w.astype(mxu_dtype)
    prec = jax.lax.Precision.HIGHEST if x.dtype == jnp.float32 else None
    acc = jnp.dot(x, w, preferred_element_type=jnp.float32, precision=prec)
    acc = acc + b_ref[...].astype(jnp.float32)       # broadcast bias over rows
    o_ref[...] = acc.astype(o_ref.dtype)


def classification_head(x, W, b, *, tm=None, tn=None, mxu_bf16=True):
    """x: [batch, pos, d_model], W: [d_model, num_labels], b: [num_labels]
       -> [batch, pos, num_labels]  (== x @ W + b)."""
    batch, pos, d_model = x.shape
    d_model_w, num_labels = W.shape
    assert d_model_w == d_model
    out_dtype = x.dtype

    M = batch * pos
    n_pad = _round_up(max(num_labels, 1), 128)       # lane-dense label dim
    sub = _sublane(x.dtype)
    vmem_limit, tile_budget = _vmem_sizes()

    if tn is None:
        tn = _auto_tn(d_model, n_pad, W.dtype, tile_budget)
    tn = min(max(_round_up(tn, 128), 128), n_pad)
    if tm is None:
        tm = _auto_tm(M, d_model, tn, x.dtype, out_dtype, W.dtype, sub, tile_budget)
    tm = max(_round_up(tm, sub), sub)

    x2d = x.reshape(M, d_model)                      # no row padding: cdiv grid + masked edge stores
    if n_pad != num_labels:
        W_p = jnp.pad(W, ((0, 0), (0, n_pad - num_labels)))
        b_p = jnp.pad(b, (0, n_pad - num_labels))
    else:
        W_p, b_p = W, b
    b_p = b_p.reshape(1, n_pad)

    grid = (pl.cdiv(M, tm), pl.cdiv(n_pad, tn))

    mxu_dtype = jnp.bfloat16 if (mxu_bf16 and x.dtype == jnp.float32) else None
    kernel = functools.partial(_head_kernel, mxu_dtype=mxu_dtype)

    out2d = pl.pallas_call(
        kernel,
        out_shape=jax.ShapeDtypeStruct((M, n_pad), out_dtype),
        grid_spec=pltpu.PrefetchScalarGridSpec(
            num_scalar_prefetch=0,
            grid=grid,
            in_specs=[
                pl.BlockSpec((tm, d_model), lambda i, j: (i, 0)),   # x row tile (resident across j)
                pl.BlockSpec((d_model, tn), lambda i, j: (0, j)),   # W label tile
                pl.BlockSpec((1, tn), lambda i, j: (0, j)),         # bias label tile
            ],
            out_specs=pl.BlockSpec((tm, tn), lambda i, j: (i, j)),
        ),
        compiler_params=pltpu.CompilerParams(
            dimension_semantics=("parallel", "parallel"),
            vmem_limit_bytes=vmem_limit,
        ),
    )(x2d, W_p, b_p)

    # TODO(synk): for small d_model the label-pad slice is an extra HBM pass over
    # the output; fuse with the consumer / accept the padded layout downstream.
    if n_pad != num_labels:
        out2d = out2d[:, :num_labels]
    return out2d.reshape(batch, pos, num_labels)


if __name__ == "__main__":
    key = jax.random.PRNGKey(0)

    def run_case(batch, pos, d_model, num_labels, dtype, tol, **kw):
        k1, k2, k3 = jax.random.split(jax.random.fold_in(key, d_model + num_labels), 3)
        W = (jax.random.normal(k1, (d_model, num_labels), jnp.float32)
             / jnp.sqrt(d_model)).astype(dtype)
        b = (0.1 * jax.random.normal(k3, (num_labels,), jnp.float32)).astype(dtype)
        x = jax.random.normal(k2, (batch, pos, d_model), jnp.float32).astype(dtype)

        out = jax.block_until_ready(classification_head(x, W, b, **kw))

        ref = (jnp.einsum("bpd,dl->bpl", x.astype(jnp.float32), W.astype(jnp.float32))
               + b.astype(jnp.float32))
        assert out.shape == (batch, pos, num_labels)
        assert jnp.allclose(out.astype(jnp.float32), ref, atol=tol, rtol=tol), (
            f"mismatch: max abs err = {jnp.max(jnp.abs(out.astype(jnp.float32) - ref))}")

    # f32, exact f32 MXU path (HIGHEST precision), evenly divisible rows
    run_case(batch=2, pos=8, d_model=32, num_labels=4, dtype=jnp.float32, tol=2e-3,
             mxu_bf16=False)
    # f32 inputs, default bf16-MXU path, ragged M=15 (exercises cdiv edge block)
    run_case(batch=3, pos=5, d_model=64, num_labels=3, dtype=jnp.float32, tol=3e-2)
    # bf16 inputs (sublane=16 tiles, f32 MXU accumulation, f32 bias add)
    run_case(batch=2, pos=8, d_model=32, num_labels=4, dtype=jnp.bfloat16, tol=3e-2)
    # num_labels > 128 with forced tn=128 (exercises the 2-D grid / label tiling)
    run_case(batch=2, pos=4, d_model=64, num_labels=200, dtype=jnp.float32, tol=3e-2,
             tn=128)

    print("KERNEL_OK")
</pallas_src>

<mosaic_0001>
module attributes {stable_mosaic.version = 11 : i64} {
  func.func @_head_kernel(%arg0: i32, %arg1: i32, %arg2: memref<8x32xf32, #tpu.memory_space<vmem>>, %arg3: memref<32x128xf32, #tpu.memory_space<vmem>>, %arg4: memref<1x128xf32, #tpu.memory_space<vmem>>, %arg5: memref<8x128xf32, #tpu.memory_space<vmem>>) attributes {dimension_semantics = [#tpu.dimension_semantics<parallel>, #tpu.dimension_semantics<parallel>], iteration_bounds = array<i64: 2, 1>, scalar_prefetch = 0 : i64, scratch_operands = 0 : i64, tpu.core_type = #tpu.core_type<tc>, window_params = [{transform_indices = @transform_0, window_bounds = array<i64: 8, 32>}, {transform_indices = @transform_1, window_bounds = array<i64: 32, 128>}, {transform_indices = @transform_2, window_bounds = array<i64: 1, 128>}, {transform_indices = @transform_3, window_bounds = array<i64: 8, 128>}]} {
    %c0 = arith.constant 0 : index
    %c0_0 = arith.constant 0 : index
    %0 = vector.load %arg2[%c0, %c0_0] : memref<8x32xf32, #tpu.memory_space<vmem>>, vector<8x32xf32>
    %c0_1 = arith.constant 0 : index
    %c0_2 = arith.constant 0 : index
    %1 = vector.load %arg3[%c0_1, %c0_2] : memref<32x128xf32, #tpu.memory_space<vmem>>, vector<32x128xf32>
    %cst = arith.constant dense<0.000000e+00> : vector<8x128xf32>
    %2 = tpu.matmul %0, %1, %cst {dimension_numbers = #tpu.dot_dimension_numbers<[1], [0], [0], [1], [0, 0, 1, 1], [], []>, precision = #tpu.contract_precision<fp32>} : vector<8x32xf32>, vector<32x128xf32>, vector<8x128xf32> -> vector<8x128xf32>
    %c0_3 = arith.constant 0 : index
    %c0_4 = arith.constant 0 : index
    %3 = vector.load %arg4[%c0_3, %c0_4] : memref<1x128xf32, #tpu.memory_space<vmem>>, vector<1x128xf32>
    %4 = vector.broadcast %3 : vector<1x128xf32> to vector<8x128xf32>
    %5 = arith.addf %2, %4 : vector<8x128xf32>
    %c0_5 = arith.constant 0 : index
    %c0_6 = arith.constant 0 : index
    %6 = vector.load %arg5[%c0_5, %c0_6] : memref<8x128xf32, #tpu.memory_space<vmem>>, vector<8x128xf32>
    tpu.vector_store %arg5[%c0_5, %c0_6], %5 {strides = array<i32>} : memref<8x128xf32, #tpu.memory_space<vmem>>, vector<8x128xf32>,
    return
  }
  func.func @transform_0(%arg0: i32, %arg1: i32) -> (i32, i32) {
    %c0_i32 = arith.constant 0 : i32
    %c0_i32_0 = arith.constant 0 : i32
    return %arg0, %c0_i32 : i32, i32
  }
  func.func @transform_1(%arg0: i32, %arg1: i32) -> (i32, i32) {
    %c0_i32 = arith.constant 0 : i32
    %c0_i32_0 = arith.constant 0 : i32
    return %c0_i32, %arg1 : i32, i32
  }
  func.func @transform_2(%arg0: i32, %arg1: i32) -> (i32, i32) {
    %c0_i32 = arith.constant 0 : i32
    %c0_i32_0 = arith.constant 0 : i32
    return %c0_i32, %arg1 : i32, i32
  }
  func.func @transform_3(%arg0: i32, %arg1: i32) -> (i32, i32) {
    %c0_i32 = arith.constant 0 : i32
    return %arg0, %arg1 : i32, i32
  }
}

</mosaic_0001>

<llo_original>
// kernel: tpu_custom_call.1
$region0: #{tpu_custom_call.1}
  #allocation0 [shape = 'u32[]', space=smem, size = 0x4, offset = 0x4, fixed_abs, tag = 'smem constant byte address 0x4 - core index']
  #allocation1 [shape = 'u32[144,128]{1,0:T(1,128)}', space=vmem, size = 0x12000, scoped, tag = 'internal scratch']
  %s0 = inlined_call_operand.hbm [shape: f32[16,32], index: 0, kind: input, shape index: {}]
  %s1 = inlined_call_operand.hbm [shape: f32[32,128], index: 1, kind: input, shape index: {}]
  %s2 = inlined_call_operand.vmem [shape: f32[1,128], index: 2, kind: input, shape index: {}]
  %s3 = inlined_call_operand.hbm [shape: f32[16,128], index: 3, kind: output, shape index: {}]
  %s4 = sld [smem:[#allocation0]]
  $region53: #{tpu_custom_call.1} parent=0
    _
  %s6 = ssub.s32 1, %s4
  %s7 = scalar_select 0, %s6, %s4
  $region1: #{tpu_custom_call.1} parent=0
    #allocation2 [shape = 'u8[8192]{0}', space=vmem, size = 0x2000, scoped, tag = 'input window, operand 0']
    #allocation3 [shape = 's32[2]{0}', space=sflag, size = 0x8, scoped, tag = 'scoped memory for tpu_custom_call.1']
    #allocation4 [shape = 's32[2]{0}', space=sflag, size = 0x8, scoped, tag = 'scoped memory for tpu_custom_call.1']
    #allocation5 [shape = 'u8[16384]{0}', space=vmem, size = 0x4000, scoped, tag = 'input window, operand 1, single buffered']
    #allocation6 [shape = 's32[1]{0}', space=sflag, size = 0x4, scoped, tag = 'scoped memory for tpu_custom_call.1']
    #allocation7 [shape = 'u8[8192]{0}', space=vmem, size = 0x2000, scoped, tag = 'output window, operand 0']
    %8 = vsyncpa [#allocation3], 0
    %s9 = scalar_lea.sflag [#allocation3], 1
    %10 = vsyncpa %s9, 0
    %11 = vsyncpa [#allocation6], 0
    %12 = vsyncpa [#allocation4], 0
    %s13 = scalar_lea.sflag [#allocation4], 1
    %14 = vsyncpa %s13, 0
    loop: start=0, step=1, limit=4
    $region2: #{tpu_custom_call.1} parent=1 // loop_pre_header
      _
    $region3: #{tpu_custom_call.1} parent=1 // loop_header
      %s16 = sphi 0, %s20
      %p17 = scmp.ge.s32.totalorder %s16, 4
      %s23 = sphi 0, %s35
      %s24 = sphi 0, %s31
      %s25 = sphi 0, %s23
      %s26 = sphi 0, %s24
      %s27 = sphi 0, %s25
      %s28 = sphi 0, %s26
      %s38 = sphi 0, %s40
      %s41 = sphi 0, %s38
      %s42 = sphi 0, %s41
      %s58 = sphi 0, %s42
      %s64 = sphi 0, %s66
      %s67 = sphi 0, %s64
      %s68 = sphi 0, %s67
      %s84 = sphi 0, %s68
      %s90 = sphi 0, %s92
      %s93 = sphi 0, %s90
      %s94 = sphi 0, %s93
      %s110 = sphi 0, %s94
      %s118 = sphi 0, %s120
      %s121 = sphi 0, %s118
      %s122 = sphi 0, %s121
      %s138 = sphi 0, %s122
    $region4: #{tpu_custom_call.1} parent=1 // loop_header_branch
      %19 = sbr.rel (%p17) target = $region8
    $region5: #{tpu_custom_call.1} parent=1 // loop_body
      %s21 = ssub.s32 %s16, 1
      %s22 = ssub.s32 %s16, 2
      %s29 = sadd.s32 1, %s24
      %p30 = scmp.ge.s32.totalorder %s29, 1
      %s31 = scalar_select %p30, 0, %s29
      %s32 = sadd.s32 1, %s23
      %s33 = scalar_select %p30, %s32, %s23
      %p34 = scmp.ge.s32.totalorder %s33, 2
      %s35 = scalar_select %p34, 0, %s33
      %s36 = ssub.s32 %s23, %s35
      %p37 = scmp.eq.s32.totalorder %s36, 0
      %s39 = sadd.s32 %s38, 1
      %s40 = scalar_select %p37, %s38, %s39
      %p43 = pneg %p37
      %p44 = scmp.eq.s32.totalorder %s16, 1
      %p45 = por %p43, %p44
      %p46 = scmp.ne.s32.totalorder %s38, %s41
      %p47 = scmp.eq.s32.totalorder %s16, 0
      %p48 = por %p46, %p47
      %p49 = scmp.ne.s32.totalorder %s38, %s41
      %p50 = scmp.eq.s32.totalorder %s21, 1
      %p51 = por %p49, %p50
      %p52 = scmp.ne.s32.totalorder %s41, %s42
      %p53 = scmp.eq.s32.totalorder %s21, 0
      %p54 = por %p52, %p53
      %p55 = scmp.ne.s32.totalorder %s41, %s42
      %p56 = scmp.eq.s32.totalorder %s22, 1
      %p57 = por %p55, %p56
      %p59 = scmp.ne.s32.totalorder %s42, %s58
      %p60 = scmp.eq.s32.totalorder %s22, 0
      %p61 = por %p59, %p60
      %s62 = ssub.s32 %s24, %s31
      %p63 = scmp.eq.s32.totalorder %s62, 0
      %s65 = sadd.s32 %s64, 1
      %s66 = scalar_select %p63, %s64, %s65
      %p69 = pneg %p63
      %p70 = scmp.eq.s32.totalorder %s16, 1
      %p71 = por %p69, %p70
      %p72 = scmp.ne.s32.totalorder %s64, %s67
      %p73 = scmp.eq.s32.totalorder %s16, 0
      %p74 = por %p72, %p73
      %p75 = scmp.ne.s32.totalorder %s64, %s67
      %p76 = scmp.eq.s32.totalorder %s21, 1
      %p77 = por %p75, %p76
      %p78 = scmp.ne.s32.totalorder %s67, %s68
      %p79 = scmp.eq.s32.totalorder %s21, 0
      %p80 = por %p78, %p79
      %p81 = scmp.ne.s32.totalorder %s67, %s68
      %p82 = scmp.eq.s32.totalorder %s22, 1
      %p83 = por %p81, %p82
      %p85 = scmp.ne.s32.totalorder %s68, %s84
      %p86 = scmp.eq.s32.totalorder %s22, 0
      %p87 = por %p85, %p86
      %s88 = ssub.s32 %s24, %s31
      %p89 = scmp.eq.s32.totalorder %s88, 0
      %s91 = sadd.s32 %s90, 1
      %s92 = scalar_select %p89, %s90, %s91
      %p95 = pneg %p89
      %p96 = scmp.eq.s32.totalorder %s16, 1
      %p97 = por %p95, %p96
      %p98 = scmp.ne.s32.totalorder %s90, %s93
      %p99 = scmp.eq.s32.totalorder %s16, 0
      %p100 = por %p98, %p99
      %p101 = scmp.ne.s32.totalorder %s90, %s93
      %p102 = scmp.eq.s32.totalorder %s21, 1
      %p103 = por %p101, %p102
      %p104 = scmp.ne.s32.totalorder %s93, %s94
      %p105 = scmp.eq.s32.totalorder %s21, 0
      %p106 = por %p104, %p105
      %p107 = scmp.ne.s32.totalorder %s93, %s94
      %p108 = scmp.eq.s32.totalorder %s22, 1
      %p109 = por %p107, %p108
      %p111 = scmp.ne.s32.totalorder %s94, %s110
      %p112 = scmp.eq.s32.totalorder %s22, 0
      %p113 = por %p111, %p112
      %s114 = ssub.s32 %s23, %s35
      %s115 = ssub.s32 %s24, %s31
      %s116 = sor.u32 %s114, %s115
      %p117 = scmp.eq.s32.totalorder %s116, 0
      %s119 = sadd.s32 %s118, 1
      %s120 = scalar_select %p117, %s118, %s119
      %p123 = pneg %p117
      %p124 = scmp.eq.s32.totalorder %s16, 1
      %p125 = por %p123, %p124
      %p126 = scmp.ne.s32.totalorder %s118, %s121
      %p127 = scmp.eq.s32.totalorder %s16, 0
      %p128 = por %p126, %p127
      %p129 = scmp.ne.s32.totalorder %s118, %s121
      %p130 = scmp.eq.s32.totalorder %s21, 1
      %p131 = por %p129, %p130
      %p132 = scmp.ne.s32.totalorder %s121, %s122
      %p133 = scmp.eq.s32.totalorder %s21, 0
      %p134 = por %p132, %p133
      %p135 = scmp.ne.s32.totalorder %s121, %s122
      %p136 = scmp.eq.s32.totalorder %s22, 1
      %p137 = por %p135, %p136
      %p139 = scmp.ne.s32.totalorder %s122, %s138
      %p140 = scmp.eq.s32.totalorder %s22, 0
      %p141 = por %p139, %p140
      %p142 = scmp.le.s32.totalorder 1, %s16
      %p143 = scmp.lt.s32.totalorder %s16, 3
      %p144 = pnand %p142, %p143
      %p145 = pneg %p144
      // Predicated region
      $region9: #{tpu_custom_call.1} parent=5 // pred_check
        _
      $region10: #{tpu_custom_call.1} parent=5 // pred_check_branch
        %147 = sbr.rel (%p144) target = $region12
      $region11: #{tpu_custom_call.1} parent=5 // pred_region
        %s148 = ssub.s32 %s16, 1
        // Predicated region
        $region13: #{tpu_custom_call.1} parent=11 // pred_check
          %p149 = pneg %p80
        $region14: #{tpu_custom_call.1} parent=11 // pred_check_branch
          %151 = sbr.rel (%p149) target = $region16
        $region15: #{tpu_custom_call.1} parent=11 // pred_region
          %s153 = ssub.s32 512, 512
          %154 = vsyncadd [#allocation6], %s153
          %s155 = smul.addr %s26, 128
          %s156 = scalar_lea.hbm %s1, %s155
          %s157 = sshll.u32 [#allocation5], 4
          %s158 = int_to_ptr.vmem [resolvable:$true] %s157
          %163 = dma.hbm_to_vmem [thread:$0]  %s156, 512, %s158, [#allocation6], 128, 128, 8
        $region16: #{tpu_custom_call.1} parent=11 // pred_fallthru
          _
        // Predicated region
        $region17: #{tpu_custom_call.1} parent=11 // pred_check
          %p164 = pneg %p106
        $region18: #{tpu_custom_call.1} parent=11 // pred_check_branch
          %166 = sbr.rel (%p164) target = $region20
        $region19: #{tpu_custom_call.1} parent=11 // pred_region
          %p167 = scmp.lt.s32.totalorder %s26, 0
          %s168 = scalar_select %p167, %s26, 0
          %s169 = scalar_lea.vmem %s2, %s168
        $region20: #{tpu_custom_call.1} parent=11 // pred_fallthru
          _
      $region12: #{tpu_custom_call.1} parent=5 // pred_fallthru
        _
      %p170 = scmp.lt.s32.totalorder %s16, 2
      // Predicated region
      $region21: #{tpu_custom_call.1} parent=5 // pred_check
        %p171 = pneg %p170
      $region22: #{tpu_custom_call.1} parent=5 // pred_check_branch
        %173 = sbr.rel (%p171) target = $region24
      $region23: #{tpu_custom_call.1} parent=5 // pred_region
        // Predicated region
        $region25: #{tpu_custom_call.1} parent=23 // pred_check
          %p174 = pneg %p48
        $region26: #{tpu_custom_call.1} parent=23 // pred_check_branch
          %176 = sbr.rel (%p174) target = $region28
        $region27: #{tpu_custom_call.1} parent=23 // pred_region
          %s177 = sand.u32 %s38, 1
          %s178 = scalar_lea.sflag [#allocation3], %s177
          %s179 = sand.u32 %s38, 1
          %s180 = smul.addr %s179, 8
          %s181 = scalar_lea.vmem [#allocation2], %s180
          %s183 = ssub.s32 128, 128
          %184 = vsyncadd %s178, %s183
          %s185 = smul.addr %s23, 128
          %s186 = scalar_lea.hbm %s0, %s185
          %s188 = sshll.u32 %s181, 4
          %s189 = int_to_ptr.vmem [resolvable:$true] %s188
          %191 = dma.hbm_to_vmem [thread:$0]  %s186, 128, %s189, %s178
        $region28: #{tpu_custom_call.1} parent=23 // pred_fallthru
          _
      $region24: #{tpu_custom_call.1} parent=5 // pred_fallthru
        _
      %p192 = scmp.le.s32.totalorder 1, %s16
      %p193 = scmp.lt.s32.totalorder %s16, 3
      %p194 = pnand %p192, %p193
      %p195 = pneg %p194
      // Predicated region
      $region29: #{tpu_custom_call.1} parent=5 // pred_check
        _
      $region30: #{tpu_custom_call.1} parent=5 // pred_check_branch
        %197 = sbr.rel (%p194) target = $region32
      $region31: #{tpu_custom_call.1} parent=5 // pred_region
        %s198 = ssub.s32 %s16, 1
        %s199 = sand.u32 %s41, 1
        %s200 = scalar_lea.sflag [#allocation3], %s199
        %s201 = sand.u32 %s41, 1
        %s202 = smul.addr %s201, 8
        %s203 = scalar_lea.vmem [#allocation2], %s202
        // Predicated region
        $region33: #{tpu_custom_call.1} parent=31 // pred_check
          %p204 = pneg %p54
        $region34: #{tpu_custom_call.1} parent=31 // pred_check_branch
          %206 = sbr.rel (%p204) target = $region36
        $region35: #{tpu_custom_call.1} parent=31 // pred_region
          %207 = dma.done %s200, 128
        $region36: #{tpu_custom_call.1} parent=31 // pred_fallthru
          _
        // Predicated region
        $region37: #{tpu_custom_call.1} parent=31 // pred_check
          %p208 = pneg %p80
        $region38: #{tpu_custom_call.1} parent=31 // pred_check_branch
          %210 = sbr.rel (%p208) target = $region40
        $region39: #{tpu_custom_call.1} parent=31 // pred_region
          %211 = dma.done [#allocation6], 512
        $region40: #{tpu_custom_call.1} parent=31 // pred_fallthru
          _
        %s212 = sand.u32 %s41, 1
        %s213 = scalar_lea.sflag [#allocation3], %s212
        %s214 = sand.u32 %s41, 1
        %s215 = smul.addr %s214, 8
        %s216 = scalar_lea.vmem [#allocation2], %s215
        %p217 = pneg %p54
        %p218 = pneg %p51
        %p219 = pneg %p80
        %p220 = pneg %p77
        %p221 = scmp.lt.s32.totalorder %s26, 0
        %s222 = scalar_select %p221, %s26, 0
        %s223 = scalar_lea.vmem %s2, %s222
        %p224 = pneg %p106
        %p225 = pneg %p103
        %p226 = pneg %p134
        %p227 = pneg %p131
        %s228 = sand.u32 %s121, 1
        %s229 = scalar_lea.sflag [#allocation4], %s228
        %s230 = sand.u32 %s121, 1
        %s231 = smul.addr %s230, 8
        %s232 = scalar_lea.vmem [#allocation7], %s231
        %p233 = scmp.lt.s32.totalorder %s26, 0
        %s234 = scalar_select %p233, %s26, 0
        %s235 = scalar_lea.vmem %s2, %s234
        %v236 = vld [vmem:[%s203] sm:$0xff]
        %v237 = vld [vmem:[#allocation5] sm:$0xff]
        %v238 = vld [vmem:[#allocation5 + $0x8] sm:$0xff]
        %v239 = vld [vmem:[#allocation5 + $0x10] sm:$0xff]
        %v240 = vld [vmem:[#allocation5 + $0x18] sm:$0xff]
        %v241 = vld [vmem:[%s235] sm:$0x1]
        %v243 = vlaneseq
        %v244 = vshrl.u32 %v243, 7
        %v245 = vsub.s32 0, %v244
        %v246 = vrot.slane %v241, %v245
        %vm248 = vcmask 261120
        %v250 = vsel %vm248, %v236, 0
        %252 = vmatprep.subr.mxu0 0.0
        %253 = vmatpush1.msra.mxu0 0.0
        %254 = vmatprep.subr.mxu0 0.0
        %255 = vmatpush1.msra.mxu0 0.0
        %256 = vmatprep.subr.mxu0 0.0
        %257 = vmatpush1.msra.mxu0 0.0
        %258 = vmatprep.subr.mxu0 0.0
        %259 = vmatpush1.msra.mxu0 0.0
        %260 = vmatprep.subr.mxu0 0.0
        %261 = vmatpush1.msra.mxu0 0.0
        %262 = vmatprep.subr.mxu0 0.0
        %263 = vmatpush1.msra.mxu0 0.0
        %264 = vmatprep.subr.mxu0 0.0
        %265 = vmatpush1.msra.mxu0 0.0
        %266 = vmatprep.subr.mxu0 0.0
        %267 = vmatpush1.msra.mxu0 0.0
        %268 = vmatprep.subr.mxu0 0.0
        %269 = vmatpush1.msra.mxu0 0.0
        %270 = vmatprep.subr.mxu0 0.0
        %271 = vmatpush1.msra.mxu0 0.0
        %272 = vmatprep.subr.mxu0 0.0
        %273 = vmatpush1.msra.mxu0 0.0
        %274 = vmatprep.subr.mxu0 0.0
        %275 = vmatpush1.msra.mxu0 0.0
        %276 = vmatprep.subr.mxu0 0.0
        %v277 = vand.u32 %v240, 4294901760
        %278 = vmatpush1.msra.mxu0 %v277
        %279 = vmatprep.subr.mxu0 0.0
        %v280 = vand.u32 %v239, 4294901760
        %281 = vmatpush1.msra.mxu0 %v280
        %282 = vmatprep.subr.mxu0 0.0
        %v283 = vand.u32 %v238, 4294901760
        %284 = vmatpush1.msra.mxu0 %v283
        %285 = vmatprep.subr.mxu0 0.0
        %v286 = vand.u32 %v237, 4294901760
        %287 = vmatpush1.msra.mxu0 %v286
        %288 = vmatprep.subr.mxu0 0.0
        %289 = vmatpush2.msra.mxu0 0.0
        %290 = vmatprep.subr.mxu0 0.0
        %291 = vmatpush2.msra.mxu0 0.0
        %292 = vmatprep.subr.mxu0 0.0
        %293 = vmatpush2.msra.mxu0 0.0
        %294 = vmatprep.subr.mxu0 0.0
        %295 = vmatpush2.msra.mxu0 0.0
        %296 = vmatprep.subr.mxu0 0.0
        %297 = vmatpush2.msra.mxu0 0.0
        %298 = vmatprep.subr.mxu0 0.0
        %299 = vmatpush2.msra.mxu0 0.0
        %300 = vmatprep.subr.mxu0 0.0
        %301 = vmatpush2.msra.mxu0 0.0
        %302 = vmatprep.subr.mxu0 0.0
        %303 = vmatpush2.msra.mxu0 0.0
        %304 = vmatprep.subr.mxu0 0.0
        %305 = vmatpush2.msra.mxu0 0.0
        %306 = vmatprep.subr.mxu0 0.0
        %307 = vmatpush2.msra.mxu0 0.0
        %308 = vmatprep.subr.mxu0 0.0
        %309 = vmatpush2.msra.mxu0 0.0
        %310 = vmatprep.subr.mxu0 0.0
        %311 = vmatpush2.msra.mxu0 0.0
        %312 = vmatprep.subr.mxu0 0.0
        %313 = vmatpush2.msra.mxu0 0.0
        %314 = vmatprep.subr.mxu0 0.0
        %315 = vmatpush2.msra.mxu0 0.0
        %316 = vmatprep.subr.mxu0 0.0
        %317 = vmatpush2.msra.mxu0 0.0
        %318 = vmatprep.subr.mxu0 0.0
        %319 = vmatpush2.msra.mxu0 0.0
        %320 = vmatprep.mubr.f32.mxu0 0.0
        %v321 = vand.u32 %v250, 4294901760
        %v322 = vsub.f32 %v250, %v321
        %v323 = vand.u32 %v322, 4294901760
        %v324 = vsub.f32 %v322, %v323
        %v325 = vand.u32 %v324, 4294901760
        %326 = vmatmul.mubr.f32.gmra.mxu0 %v325
        %v327 = vpop.f32.mrf.mxu0
        %v328 = vadd.f32 %v246, %v327
        %v329 = vpop.f32.mrf.mxu0
        %330 = vdwg.mxu0
        %331 = vmatprep.subr.mxu0 0.0
        %332 = vmatpush1.msra.mxu0 0.0
        %333 = vmatprep.subr.mxu0 0.0
        %334 = vmatpush1.msra.mxu0 0.0
        %335 = vmatprep.subr.mxu0 0.0
        %336 = vmatpush1.msra.mxu0 0.0
        %337 = vmatprep.subr.mxu0 0.0
        %338 = vmatpush1.msra.mxu0 0.0
        %339 = vmatprep.subr.mxu0 0.0
        %340 = vmatpush1.msra.mxu0 0.0
        %341 = vmatprep.subr.mxu0 0.0
        %342 = vmatpush1.msra.mxu0 0.0
        %343 = vmatprep.subr.mxu0 0.0
        %344 = vmatpush1.msra.mxu0 0.0
        %345 = vmatprep.subr.mxu0 0.0
        %346 = vmatpush1.msra.mxu0 0.0
        %347 = vmatprep.subr.mxu0 0.0
        %348 = vmatpush1.msra.mxu0 0.0
        %349 = vmatprep.subr.mxu0 0.0
        %350 = vmatpush1.msra.mxu0 0.0
        %351 = vmatprep.subr.mxu0 0.0
        %352 = vmatpush1.msra.mxu0 0.0
        %353 = vmatprep.subr.mxu0 0.0
        %354 = vmatpush1.msra.mxu0 0.0
        %355 = vmatprep.subr.mxu0 0.0
        %v356 = vand.u32 %v240, 4294901760
        %v357 = vsub.f32 %v240, %v356
        %v358 = vand.u32 %v357, 4294901760
        %v359 = vsub.f32 %v357, %v358
        %v360 = vand.u32 %v359, 4294901760
        %361 = vmatpush1.msra.mxu0 %v360
        %362 = vmatprep.subr.mxu0 0.0
        %v363 = vand.u32 %v239, 4294901760
        %v364 = vsub.f32 %v239, %v363
        %v365 = vand.u32 %v364, 4294901760
        %v366 = vsub.f32 %v364, %v365
        %v367 = vand.u32 %v366, 4294901760
        %368 = vmatpush1.msra.mxu0 %v367
        %369 = vmatprep.subr.mxu0 0.0
        %v370 = vand.u32 %v238, 4294901760
        %v371 = vsub.f32 %v238, %v370
        %v372 = vand.u32 %v371, 4294901760
        %v373 = vsub.f32 %v371, %v372
        %v374 = vand.u32 %v373, 4294901760
        %375 = vmatpush1.msra.mxu0 %v374
        %376 = vmatprep.subr.mxu0 0.0
        %v377 = vand.u32 %v237, 4294901760
        %v378 = vsub.f32 %v237, %v377
        %v379 = vand.u32 %v378, 4294901760
        %v380 = vsub.f32 %v378, %v379
        %v381 = vand.u32 %v380, 4294901760
        %382 = vmatpush1.msra.mxu0 %v381
        %383 = vmatprep.subr.mxu0 0.0
        %384 = vmatpush2.msra.mxu0 0.0
        %385 = vmatprep.subr.mxu0 0.0
        %386 = vmatpush2.msra.mxu0 0.0
        %387 = vmatprep.subr.mxu0 0.0
        %388 = vmatpush2.msra.mxu0 0.0
        %389 = vmatprep.subr.mxu0 0.0
        %390 = vmatpush2.msra.mxu0 0.0
        %391 = vmatprep.subr.mxu0 0.0
        %392 = vmatpush2.msra.mxu0 0.0
        %393 = vmatprep.subr.mxu0 0.0
        %394 = vmatpush2.msra.mxu0 0.0
        %395 = vmatprep.subr.mxu0 0.0
        %396 = vmatpush2.msra.mxu0 0.0
        %397 = vmatprep.subr.mxu0 0.0
        %398 = vmatpush2.msra.mxu0 0.0
        %399 = vmatprep.subr.mxu0 0.0
        %400 = vmatpush2.msra.mxu0 0.0
        %401 = vmatprep.subr.mxu0 0.0
        %402 = vmatpush2.msra.mxu0 0.0
        %403 = vmatprep.subr.mxu0 0.0
        %404 = vmatpush2.msra.mxu0 0.0
        %405 = vmatprep.subr.mxu0 0.0
        %406 = vmatpush2.msra.mxu0 0.0
        %407 = vmatprep.subr.mxu0 0.0
        %408 = vmatpush2.msra.mxu0 0.0
        %409 = vmatprep.subr.mxu0 0.0
        %410 = vmatpush2.msra.mxu0 0.0
        %411 = vmatprep.subr.mxu0 0.0
        %412 = vmatpush2.msra.mxu0 0.0
        %413 = vmatprep.subr.mxu0 0.0
        %414 = vmatpush2.msra.mxu0 0.0
        %415 = vmatprep.mubr.f32.mxu0 0.0
        %v416 = vand.u32 %v250, 4294901760
        %417 = vmatmul.mubr.f32.gmra.mxu0 %v416
        %v418 = vpop.f32.mrf.mxu0
        %v419 = vadd.f32 %v328, %v418
        %v420 = vpop.f32.mrf.mxu0
        %421 = vdwg.mxu0
        %422 = vmatprep.subr.mxu0 0.0
        %423 = vmatpush1.msra.mxu0 0.0
        %424 = vmatprep.subr.mxu0 0.0
        %425 = vmatpush1.msra.mxu0 0.0
        %426 = vmatprep.subr.mxu0 0.0
        %427 = vmatpush1.msra.mxu0 0.0
        %428 = vmatprep.subr.mxu0 0.0
        %429 = vmatpush1.msra.mxu0 0.0
        %430 = vmatprep.subr.mxu0 0.0
        %431 = vmatpush1.msra.mxu0 0.0
        %432 = vmatprep.subr.mxu0 0.0
        %433 = vmatpush1.msra.mxu0 0.0
        %434 = vmatprep.subr.mxu0 0.0
        %435 = vmatpush1.msra.mxu0 0.0
        %436 = vmatprep.subr.mxu0 0.0
        %437 = vmatpush1.msra.mxu0 0.0
        %438 = vmatprep.subr.mxu0 0.0
        %439 = vmatpush1.msra.mxu0 0.0
        %440 = vmatprep.subr.mxu0 0.0
        %441 = vmatpush1.msra.mxu0 0.0
        %442 = vmatprep.subr.mxu0 0.0
        %443 = vmatpush1.msra.mxu0 0.0
        %444 = vmatprep.subr.mxu0 0.0
        %445 = vmatpush1.msra.mxu0 0.0
        %446 = vmatprep.subr.mxu0 0.0
        %v447 = vand.u32 %v240, 4294901760
        %v448 = vsub.f32 %v240, %v447
        %449 = vmatpush1.msra.mxu0 %v448
        %450 = vmatprep.subr.mxu0 0.0
        %v451 = vand.u32 %v239, 4294901760
        %v452 = vsub.f32 %v239, %v451
        %453 = vmatpush1.msra.mxu0 %v452
        %454 = vmatprep.subr.mxu0 0.0
        %v455 = vand.u32 %v238, 4294901760
        %v456 = vsub.f32 %v238, %v455
        %457 = vmatpush1.msra.mxu0 %v456
        %458 = vmatprep.subr.mxu0 0.0
        %v459 = vand.u32 %v237, 4294901760
        %v460 = vsub.f32 %v237, %v459
        %461 = vmatpush1.msra.mxu0 %v460
        %462 = vmatprep.subr.mxu0 0.0
        %463 = vmatpush2.msra.mxu0 0.0
        %464 = vmatprep.subr.mxu0 0.0
        %465 = vmatpush2.msra.mxu0 0.0
        %466 = vmatprep.subr.mxu0 0.0
        %467 = vmatpush2.msra.mxu0 0.0
        %468 = vmatprep.subr.mxu0 0.0
        %469 = vmatpush2.msra.mxu0 0.0
        %470 = vmatprep.subr.mxu0 0.0
        %471 = vmatpush2.msra.mxu0 0.0
        %472 = vmatprep.subr.mxu0 0.0
        %473 = vmatpush2.msra.mxu0 0.0
        %474 = vmatprep.subr.mxu0 0.0
        %475 = vmatpush2.msra.mxu0 0.0
        %476 = vmatprep.subr.mxu0 0.0
        %477 = vmatpush2.msra.mxu0 0.0
        %478 = vmatprep.subr.mxu0 0.0
        %479 = vmatpush2.msra.mxu0 0.0
        %480 = vmatprep.subr.mxu0 0.0
        %481 = vmatpush2.msra.mxu0 0.0
        %482 = vmatprep.subr.mxu0 0.0
        %483 = vmatpush2.msra.mxu0 0.0
        %484 = vmatprep.subr.mxu0 0.0
        %485 = vmatpush2.msra.mxu0 0.0
        %486 = vmatprep.subr.mxu0 0.0
        %487 = vmatpush2.msra.mxu0 0.0
        %488 = vmatprep.subr.mxu0 0.0
        %489 = vmatpush2.msra.mxu0 0.0
        %490 = vmatprep.subr.mxu0 0.0
        %491 = vmatpush2.msra.mxu0 0.0
        %492 = vmatprep.subr.mxu0 0.0
        %493 = vmatpush2.msra.mxu0 0.0
        %494 = vmatprep.mubr.f32.mxu0 0.0
        %v495 = vand.u32 %v250, 4294901760
        %v496 = vsub.f32 %v250, %v495
        %497 = vmatmul.mubr.f32.gmra.mxu0 %v496
        %v498 = vpop.f32.mrf.mxu0
        %v499 = vadd.f32 %v419, %v498
        %v500 = vpop.f32.mrf.mxu0
        %501 = vdwg.mxu0
        %502 = vmatprep.subr.mxu0 0.0
        %503 = vmatpush1.msra.mxu0 0.0
        %504 = vmatprep.subr.mxu0 0.0
        %505 = vmatpush1.msra.mxu0 0.0
        %506 = vmatprep.subr.mxu0 0.0
        %507 = vmatpush1.msra.mxu0 0.0
        %508 = vmatprep.subr.mxu0 0.0
        %509 = vmatpush1.msra.mxu0 0.0
        %510 = vmatprep.subr.mxu0 0.0
        %511 = vmatpush1.msra.mxu0 0.0
        %512 = vmatprep.subr.mxu0 0.0
        %513 = vmatpush1.msra.mxu0 0.0
        %514 = vmatprep.subr.mxu0 0.0
        %515 = vmatpush1.msra.mxu0 0.0
        %516 = vmatprep.subr.mxu0 0.0
        %517 = vmatpush1.msra.mxu0 0.0
        %518 = vmatprep.subr.mxu0 0.0
        %519 = vmatpush1.msra.mxu0 0.0
        %520 = vmatprep.subr.mxu0 0.0
        %521 = vmatpush1.msra.mxu0 0.0
        %522 = vmatprep.subr.mxu0 0.0
        %523 = vmatpush1.msra.mxu0 0.0
        %524 = vmatprep.subr.mxu0 0.0
        %525 = vmatpush1.msra.mxu0 0.0
        %526 = vmatprep.subr.mxu0 0.0
        %v527 = vand.u32 %v240, 4294901760
        %528 = vmatpush1.msra.mxu0 %v527
        %529 = vmatprep.subr.mxu0 0.0
        %v530 = vand.u32 %v239, 4294901760
        %531 = vmatpush1.msra.mxu0 %v530
        %532 = vmatprep.subr.mxu0 0.0
        %v533 = vand.u32 %v238, 4294901760
        %534 = vmatpush1.msra.mxu0 %v533
        %535 = vmatprep.subr.mxu0 0.0
        %v536 = vand.u32 %v237, 4294901760
        %537 = vmatpush1.msra.mxu0 %v536
        %538 = vmatprep.subr.mxu0 0.0
        %539 = vmatpush2.msra.mxu0 0.0
        %540 = vmatprep.subr.mxu0 0.0
        %541 = vmatpush2.msra.mxu0 0.0
        %542 = vmatprep.subr.mxu0 0.0
        %543 = vmatpush2.msra.mxu0 0.0
        %544 = vmatprep.subr.mxu0 0.0
        %545 = vmatpush2.msra.mxu0 0.0
        %546 = vmatprep.subr.mxu0 0.0
        %547 = vmatpush2.msra.mxu0 0.0
        %548 = vmatprep.subr.mxu0 0.0
        %549 = vmatpush2.msra.mxu0 0.0
        %550 = vmatprep.subr.mxu0 0.0
        %551 = vmatpush2.msra.mxu0 0.0
        %552 = vmatprep.subr.mxu0 0.0
        %553 = vmatpush2.msra.mxu0 0.0
        %554 = vmatprep.subr.mxu0 0.0
        %555 = vmatpush2.msra.mxu0 0.0
        %556 = vmatprep.subr.mxu0 0.0
        %557 = vmatpush2.msra.mxu0 0.0
        %558 = vmatprep.subr.mxu0 0.0
        %559 = vmatpush2.msra.mxu0 0.0
        %560 = vmatprep.subr.mxu0 0.0
        %561 = vmatpush2.msra.mxu0 0.0
        %562 = vmatprep.subr.mxu0 0.0
        %563 = vmatpush2.msra.mxu0 0.0
        %564 = vmatprep.subr.mxu0 0.0
        %565 = vmatpush2.msra.mxu0 0.0
        %566 = vmatprep.subr.mxu0 0.0
        %567 = vmatpush2.msra.mxu0 0.0
        %568 = vmatprep.subr.mxu0 0.0
        %569 = vmatpush2.msra.mxu0 0.0
        %570 = vmatprep.mubr.f32.mxu0 0.0
        %v571 = vand.u32 %v250, 4294901760
        %v572 = vsub.f32 %v250, %v571
        %v573 = vand.u32 %v572, 4294901760
        %574 = vmatmul.mubr.f32.gmra.mxu0 %v573
        %v575 = vpop.f32.mrf.mxu0
        %v576 = vadd.f32 %v499, %v575
        %v577 = vpop.f32.mrf.mxu0
        %578 = vdwg.mxu0
        %579 = vmatprep.subr.mxu0 0.0
        %580 = vmatpush1.msra.mxu0 0.0
        %581 = vmatprep.subr.mxu0 0.0
        %582 = vmatpush1.msra.mxu0 0.0
        %583 = vmatprep.subr.mxu0 0.0
        %584 = vmatpush1.msra.mxu0 0.0
        %585 = vmatprep.subr.mxu0 0.0
        %586 = vmatpush1.msra.mxu0 0.0
        %587 = vmatprep.subr.mxu0 0.0
        %588 = vmatpush1.msra.mxu0 0.0
        %589 = vmatprep.subr.mxu0 0.0
        %590 = vmatpush1.msra.mxu0 0.0
        %591 = vmatprep.subr.mxu0 0.0
        %592 = vmatpush1.msra.mxu0 0.0
        %593 = vmatprep.subr.mxu0 0.0
        %594 = vmatpush1.msra.mxu0 0.0
        %595 = vmatprep.subr.mxu0 0.0
        %596 = vmatpush1.msra.mxu0 0.0
        %597 = vmatprep.subr.mxu0 0.0
        %598 = vmatpush1.msra.mxu0 0.0
        %599 = vmatprep.subr.mxu0 0.0
        %600 = vmatpush1.msra.mxu0 0.0
        %601 = vmatprep.subr.mxu0 0.0
        %602 = vmatpush1.msra.mxu0 0.0
        %603 = vmatprep.subr.mxu0 0.0
        %v604 = vand.u32 %v240, 4294901760
        %v605 = vsub.f32 %v240, %v604
        %v606 = vand.u32 %v605, 4294901760
        %607 = vmatpush1.msra.mxu0 %v606
        %608 = vmatprep.subr.mxu0 0.0
        %v609 = vand.u32 %v239, 4294901760
        %v610 = vsub.f32 %v239, %v609
        %v611 = vand.u32 %v610, 4294901760
        %612 = vmatpush1.msra.mxu0 %v611
        %613 = vmatprep.subr.mxu0 0.0
        %v614 = vand.u32 %v238, 4294901760
        %v615 = vsub.f32 %v238, %v614
        %v616 = vand.u32 %v615, 4294901760
        %617 = vmatpush1.msra.mxu0 %v616
        %618 = vmatprep.subr.mxu0 0.0
        %v619 = vand.u32 %v237, 4294901760
        %v620 = vsub.f32 %v237, %v619
        %v621 = vand.u32 %v620, 4294901760
        %622 = vmatpush1.msra.mxu0 %v621
        %623 = vmatprep.subr.mxu0 0.0
        %624 = vmatpush2.msra.mxu0 0.0
        %625 = vmatprep.subr.mxu0 0.0
        %626 = vmatpush2.msra.mxu0 0.0
        %627 = vmatprep.subr.mxu0 0.0
        %628 = vmatpush2.msra.mxu0 0.0
        %629 = vmatprep.subr.mxu0 0.0
        %630 = vmatpush2.msra.mxu0 0.0
        %631 = vmatprep.subr.mxu0 0.0
        %632 = vmatpush2.msra.mxu0 0.0
        %633 = vmatprep.subr.mxu0 0.0
        %634 = vmatpush2.msra.mxu0 0.0
        %635 = vmatprep.subr.mxu0 0.0
        %636 = vmatpush2.msra.mxu0 0.0
        %637 = vmatprep.subr.mxu0 0.0
        %638 = vmatpush2.msra.mxu0 0.0
        %639 = vmatprep.subr.mxu0 0.0
        %640 = vmatpush2.msra.mxu0 0.0
        %641 = vmatprep.subr.mxu0 0.0
        %642 = vmatpush2.msra.mxu0 0.0
        %643 = vmatprep.subr.mxu0 0.0
        %644 = vmatpush2.msra.mxu0 0.0
        %645 = vmatprep.subr.mxu0 0.0
        %646 = vmatpush2.msra.mxu0 0.0
        %647 = vmatprep.subr.mxu0 0.0
        %648 = vmatpush2.msra.mxu0 0.0
        %649 = vmatprep.subr.mxu0 0.0
        %650 = vmatpush2.msra.mxu0 0.0
        %651 = vmatprep.subr.mxu0 0.0
        %652 = vmatpush2.msra.mxu0 0.0
        %653 = vmatprep.subr.mxu0 0.0
        %654 = vmatpush2.msra.mxu0 0.0
        %655 = vmatprep.mubr.f32.mxu0 0.0
        %v656 = vand.u32 %v250, 4294901760
        %657 = vmatmul.mubr.f32.gmra.mxu0 %v656
        %v658 = vpop.f32.mrf.mxu0
        %v659 = vadd.f32 %v576, %v658
        %v660 = vpop.f32.mrf.mxu0
        %661 = vdwg.mxu0
        %662 = vmatprep.subr.mxu0 0.0
        %663 = vmatpush1.msra.mxu0 0.0
        %664 = vmatprep.subr.mxu0 0.0
        %665 = vmatpush1.msra.mxu0 0.0
        %666 = vmatprep.subr.mxu0 0.0
        %667 = vmatpush1.msra.mxu0 0.0
        %668 = vmatprep.subr.mxu0 0.0
        %669 = vmatpush1.msra.mxu0 0.0
        %670 = vmatprep.subr.mxu0 0.0
        %671 = vmatpush1.msra.mxu0 0.0
        %672 = vmatprep.subr.mxu0 0.0
        %673 = vmatpush1.msra.mxu0 0.0
        %674 = vmatprep.subr.mxu0 0.0
        %675 = vmatpush1.msra.mxu0 0.0
        %676 = vmatprep.subr.mxu0 0.0
        %677 = vmatpush1.msra.mxu0 0.0
        %678 = vmatprep.subr.mxu0 0.0
        %679 = vmatpush1.msra.mxu0 0.0
        %680 = vmatprep.subr.mxu0 0.0
        %681 = vmatpush1.msra.mxu0 0.0
        %682 = vmatprep.subr.mxu0 0.0
        %683 = vmatpush1.msra.mxu0 0.0
        %684 = vmatprep.subr.mxu0 0.0
        %685 = vmatpush1.msra.mxu0 0.0
        %686 = vmatprep.subr.mxu0 0.0
        %v687 = vand.u32 %v240, 4294901760
        %688 = vmatpush1.msra.mxu0 %v687
        %689 = vmatprep.subr.mxu0 0.0
        %v690 = vand.u32 %v239, 4294901760
        %691 = vmatpush1.msra.mxu0 %v690
        %692 = vmatprep.subr.mxu0 0.0
        %v693 = vand.u32 %v238, 4294901760
        %694 = vmatpush1.msra.mxu0 %v693
        %695 = vmatprep.subr.mxu0 0.0
        %v696 = vand.u32 %v237, 4294901760
        %697 = vmatpush1.msra.mxu0 %v696
        %698 = vmatprep.subr.mxu0 0.0
        %699 = vmatpush2.msra.mxu0 0.0
        %700 = vmatprep.subr.mxu0 0.0
        %701 = vmatpush2.msra.mxu0 0.0
        %702 = vmatprep.subr.mxu0 0.0
        %703 = vmatpush2.msra.mxu0 0.0
        %704 = vmatprep.subr.mxu0 0.0
        %705 = vmatpush2.msra.mxu0 0.0
        %706 = vmatprep.subr.mxu0 0.0
        %707 = vmatpush2.msra.mxu0 0.0
        %708 = vmatprep.subr.mxu0 0.0
        %709 = vmatpush2.msra.mxu0 0.0
        %710 = vmatprep.subr.mxu0 0.0
        %711 = vmatpush2.msra.mxu0 0.0
        %712 = vmatprep.subr.mxu0 0.0
        %713 = vmatpush2.msra.mxu0 0.0
        %714 = vmatprep.subr.mxu0 0.0
        %715 = vmatpush2.msra.mxu0 0.0
        %716 = vmatprep.subr.mxu0 0.0
        %717 = vmatpush2.msra.mxu0 0.0
        %718 = vmatprep.subr.mxu0 0.0
        %719 = vmatpush2.msra.mxu0 0.0
        %720 = vmatprep.subr.mxu0 0.0
        %721 = vmatpush2.msra.mxu0 0.0
        %722 = vmatprep.subr.mxu0 0.0
        %723 = vmatpush2.msra.mxu0 0.0
        %724 = vmatprep.subr.mxu0 0.0
        %725 = vmatpush2.msra.mxu0 0.0
        %726 = vmatprep.subr.mxu0 0.0
        %727 = vmatpush2.msra.mxu0 0.0
        %728 = vmatprep.subr.mxu0 0.0
        %729 = vmatpush2.msra.mxu0 0.0
        %730 = vmatprep.mubr.f32.mxu0 0.0
        %v731 = vand.u32 %v250, 4294901760
        %732 = vmatmul.mubr.f32.gmra.mxu0 %v731
        %v733 = vpop.f32.mrf.mxu0
        %v734 = vadd.f32 %v659, %v733
        %v735 = vpop.f32.mrf.mxu0
        %736 = vdwg.mxu0
        %737 = vst [vmem:[%s232] sm:$0xff] %v734
        %s738 = sand.u32 %s121, 1
        %s739 = scalar_lea.sflag [#allocation4], %s738
        %s740 = sand.u32 %s121, 1
        %s741 = smul.addr %s740, 8
        %s742 = scalar_lea.vmem [#allocation7], %s741
        // Predicated region
        $region41: #{tpu_custom_call.1} parent=31 // pred_check
          %p743 = pneg %p131
        $region42: #{tpu_custom_call.1} parent=31 // pred_check_branch
          %745 = sbr.rel (%p743) target = $region44
        $region43: #{tpu_custom_call.1} parent=31 // pred_region
          %s747 = ssub.s32 128, 128
          %748 = vsyncadd %s739, %s747
          %s749 = sadd.s32 %s26, %s25
          %s750 = smul.addr %s749, 128
          %s751 = scalar_lea.hbm %s3, %s750
          %s753 = sshll.u32 %s742, 4
          %s754 = int_to_ptr.vmem [resolvable:$true] %s753
          %756 = dma.vmem_to_hbm [thread:$0]  %s754, 128, %s751, %s739
        $region44: #{tpu_custom_call.1} parent=31 // pred_fallthru
          _
      $region32: #{tpu_custom_call.1} parent=5 // pred_fallthru
        _
      %p757 = scmp.le.s32.totalorder 2, %s16
      // Predicated region
      $region45: #{tpu_custom_call.1} parent=5 // pred_check
        %p758 = pneg %p757
      $region46: #{tpu_custom_call.1} parent=5 // pred_check_branch
        %760 = sbr.rel (%p758) target = $region48
      $region47: #{tpu_custom_call.1} parent=5 // pred_region
        %s761 = ssub.s32 %s16, 2
        // Predicated region
        $region49: #{tpu_custom_call.1} parent=47 // pred_check
          %p762 = pneg %p137
        $region50: #{tpu_custom_call.1} parent=47 // pred_check_branch
          %764 = sbr.rel (%p762) target = $region52
        $region51: #{tpu_custom_call.1} parent=47 // pred_region
          %s765 = sand.u32 %s122, 1
          %s766 = scalar_lea.sflag [#allocation4], %s765
          %s767 = sand.u32 %s122, 1
          %s768 = smul.addr %s767, 8
          %s769 = scalar_lea.vmem [#allocation7], %s768
          %770 = dma.done %s766, 128
        $region52: #{tpu_custom_call.1} parent=47 // pred_fallthru
          _
      $region48: #{tpu_custom_call.1} parent=5 // pred_fallthru
        _
    $region6: #{tpu_custom_call.1} parent=1 // loop_footer
      %s20 = sadd.s32 1, %s16
    $region7: #{tpu_custom_call.1} parent=1 // loop_footer_branch
      %15 = sbr.rel target = $region3
    $region8: #{tpu_custom_call.1} parent=1 // loop_exit
      _
    %771 = vsyncpa [#allocation3], 1
    %s772 = scalar_lea.sflag [#allocation3], 1
    %773 = vsyncpa %s772, 1
    %774 = vsyncpa [#allocation6], 1
    %775 = vsyncpa [#allocation4], 1
    %s776 = scalar_lea.sflag [#allocation4], 1
    %777 = vsyncpa %s776, 1

</llo_original>
